<compile_context>
chip_gen: v5e
topology: v5e:2x2
jax: 0.10.0
libtpu: 0.0.40
codegen_flags: <defaults>
</compile_context>

<pallas_src>
import functools

import jax
import jax.numpy as jnp
from jax.experimental import pallas as pl
from jax.experimental.pallas import tpu as pltpu

BN_EPS = 1e-5
LANE = 128


def _round_up(n, m):
    return ((n + m - 1) // m) * m


def _cdiv(a, b):
    return (a + b - 1) // b


# --------------------------------------------------------------------------- #
# Kernel
# --------------------------------------------------------------------------- #
def _mlp_kernel(x_ref,
                w1_ref, b1_ref,
                w2_ref, b2_ref,
                w3_ref, b3_ref,
                wo_ref, bo_ref,
                out_ref):
    """One batch tile of the fused MLP.

    BatchNorm (eval) was folded into the adjacent Linear at param-prep time and
    Dropout (eval) is the identity, so each hidden layer is relu(x @ W + b).
    x arrives already in the MXU operand dtype (cast once in the wrapper);
    accumulation, bias-add and ReLU stay in f32.  The .astype() on hidden
    activations is a no-op when weights are f32.
    """
    def layer(h, w_ref, b_ref, relu):
        y = jnp.dot(h, w_ref[...],
                    preferred_element_type=jnp.float32) + b_ref[...]
        return jnp.maximum(y, 0.0) if relu else y

    h = layer(x_ref[...], w1_ref, b1_ref, relu=True)
    h = layer(h.astype(w2_ref.dtype), w2_ref, b2_ref, relu=True)
    h = layer(h.astype(w3_ref.dtype), w3_ref, b3_ref, relu=True)
    out_ref[...] = layer(h.astype(wo_ref.dtype), wo_ref, bo_ref,
                         relu=False).astype(out_ref.dtype)


# --------------------------------------------------------------------------- #
# Parameter preparation (done once, outside the kernel)
# --------------------------------------------------------------------------- #
def prepare_params(raw_params, *, compute_dtype=jnp.float32):
    """Fold eval-mode BN into the following Linear; pad ALL feature dims
    (including the input dim) to 128-lane multiples.

    bn(a) = (a - mean) * rsqrt(var + eps) * gamma + beta = a * s + t
    bn(a) @ W + b = a @ (diag(s) @ W) + (t @ W + b)

    compute_dtype=jnp.bfloat16 is recommended on v5e/v6e/v7x alike (full-rate
    MXU everywhere, half the resident weight VMEM); the f32 epilogue keeps
    accuracy.
    """
    (w1, b1, g1, be1, m1, v1,
     w2, b2, g2, be2, m2, v2,
     w3, b3, g3, be3, m3, v3,
     wo, bo) = raw_params

    def bn_affine(g, be, m, v):
        s = g * jax.lax.rsqrt(v + BN_EPS)
        t = be - m * s
        return s, t

    s1, t1 = bn_affine(g1, be1, m1, v1)
    s2, t2 = bn_affine(g2, be2, m2, v2)
    s3, t3 = bn_affine(g3, be3, m3, v3)

    # Fold BN_l (which follows ReLU_l) into Linear_{l+1}.
    w2f, b2f = w2 * s1[:, None], t1 @ w2 + b2
    w3f, b3f = w3 * s2[:, None], t2 @ w3 + b3
    wof, bof = wo * s3[:, None], t3 @ wo + bo

    p0 = _round_up(w1.shape[0], LANE)   # padded input dim (lane-dense x tiles)
    p1 = _round_up(w1.shape[1], LANE)
    p2 = _round_up(w2.shape[1], LANE)
    p3 = _round_up(w3.shape[1], LANE)
    p4 = _round_up(wo.shape[1], LANE)

    def prep(w, b, rows, cols):
        wp = jnp.pad(w, ((0, rows - w.shape[0]), (0, cols - w.shape[1])))
        bp = jnp.pad(b.reshape(1, -1), ((0, 0), (0, cols - b.shape[-1])))
        return wp.astype(compute_dtype), bp.astype(jnp.float32)

    w1p, b1p = prep(w1, b1, p0, p1)
    w2p, b2p = prep(w2f, b2f, p1, p2)
    w3p, b3p = prep(w3f, b3f, p2, p3)
    wop, bop = prep(wof, bof, p3, p4)
    return (w1p, b1p, w2p, b2p, w3p, b3p, wop, bop)


# --------------------------------------------------------------------------- #
# Tile selection: tile-count first, then MXU-friendly (cheap) alignment.
# --------------------------------------------------------------------------- #
def _pick_tile(B, block_batch):
    n_tiles = max(1, _cdiv(B, block_batch))
    if n_tiles > 1 and n_tiles % 2:
        n_tiles += 1                      # even tile count -> both v7x TCs busy
    tb_raw = _cdiv(B, n_tiles)
    # Prefer MXU-aligned tiles (256 on v6e/v7x, 128 on v5e) but never pay more
    # than ~12.5% row padding for the alignment; otherwise fall back to 8
    # sublanes, which bounds padding to <8 rows per tile.
    for align in (256, 128, 8):
        tb = _round_up(tb_raw, align)
        if align == 8 or (tb - tb_raw) * 8 <= tb_raw:
            return tb, n_tiles
    return _round_up(tb_raw, 8), n_tiles  # unreachable


def _const_spec(shape, single_buffer=True):
    """Whole-array block with a constant index_map (resident across the grid).
    Single-buffered when supported: the block never changes, so a second
    pipeline buffer is pure wasted VMEM (matters most under v7x's 64 MiB)."""
    index_map = lambda i: (0,) * len(shape)
    if single_buffer and hasattr(pl, "Buffered"):
        try:
            return pl.BlockSpec(shape, index_map, pipeline_mode=pl.Buffered(1))
        except Exception:   # older JAX without pipeline_mode / Buffered(1)
            pass
    return pl.BlockSpec(shape, index_map)


# --------------------------------------------------------------------------- #
# Wrapper
# --------------------------------------------------------------------------- #
@functools.partial(
    jax.jit,
    static_argnames=("out_size", "block_batch", "out_dtype", "x_buffers",
                     "vmem_limit_bytes"))
def my_sequential_model(x, prepared_params, out_size, *,
                        block_batch=512,
                        out_dtype=jnp.float32,
                        x_buffers=None,
                        vmem_limit_bytes=56 * 1024 * 1024):
    (w1, b1, w2, b2, w3, b3, wo, bo) = prepared_params
    B, d0 = x.shape
    d0_pad = w1.shape[0]
    p_out = wo.shape[1]

    TB, n_tiles = _pick_tile(B, block_batch)
    B_pad = TB * n_tiles

    # Pad batch + input features (zero rows/cols are inert) and cast x to the
    # compute dtype ONCE here, so the kernel's streaming input is lane-dense
    # and carries half the bytes when compute_dtype is bf16.
    x = jnp.pad(x, ((0, B_pad - B), (0, d0_pad - d0))).astype(w1.dtype)

    if x_buffers is None:
        x_spec = pl.BlockSpec((TB, d0_pad), lambda i: (i, 0))
    else:
        # e.g. x_buffers=3 on v5e if the input DMA is exposed.
        x_spec = pl.BlockSpec((TB, d0_pad), lambda i: (i, 0),
                              pipeline_mode=pl.Buffered(x_buffers))

    weights = (w1, b1, w2, b2, w3, b3, wo, bo)

    out = pl.pallas_call(
        _mlp_kernel,
        out_shape=jax.ShapeDtypeStruct((B_pad, p_out), out_dtype),
        grid_spec=pltpu.PrefetchScalarGridSpec(
            num_scalar_prefetch=0,
            grid=(n_tiles,),
            in_specs=[x_spec] + [_const_spec(a.shape) for a in weights],
            out_specs=pl.BlockSpec((TB, p_out), lambda i: (i, 0)),
        ),
        compiler_params=pltpu.CompilerParams(
            dimension_semantics=("parallel",),
            vmem_limit_bytes=vmem_limit_bytes),
    )(x, *weights)

    # Drop batch padding and the lane-padding columns of the output.
    return out[:B, :out_size]


# --------------------------------------------------------------------------- #
# Init (PyTorch-style) and pure-JAX reference
# --------------------------------------------------------------------------- #
def init_params(key, input_size, h1, h2, h3, output_size):
    """Deterministic PyTorch-style init. Weights stored pre-transposed (in, out).
    BN carries non-trivial running stats so the general eval path is exercised."""
    def linear(key, fan_in, fan_out):
        kw, kb = jax.random.split(key)
        bound = 1.0 / jnp.sqrt(jnp.float32(fan_in))
        w = jax.random.uniform(kw, (fan_in, fan_out), jnp.float32, -bound, bound)
        b = jax.random.uniform(kb, (fan_out,), jnp.float32, -bound, bound)
        return w, b

    def bn(key, n):
        km, kv = jax.random.split(key)
        gamma = jnp.ones((n,), jnp.float32)            # PyTorch BN init
        beta = jnp.zeros((n,), jnp.float32)
        running_mean = 0.1 * jax.random.normal(km, (n,), jnp.float32)
        running_var = jax.random.uniform(kv, (n,), jnp.float32, 0.5, 1.5)
        return gamma, beta, running_mean, running_var

    keys = jax.random.split(key, 7)
    w1, b1 = linear(keys[0], input_size, h1)
    g1, be1, m1, v1 = bn(keys[1], h1)
    w2, b2 = linear(keys[2], h1, h2)
    g2, be2, m2, v2 = bn(keys[3], h2)
    w3, b3 = linear(keys[4], h2, h3)
    g3, be3, m3, v3 = bn(keys[5], h3)
    wo, bo = linear(keys[6], h3, output_size)
    return (w1, b1, g1, be1, m1, v1,
            w2, b2, g2, be2, m2, v2,
            w3, b3, g3, be3, m3, v3,
            wo, bo)


def reference_forward(x, raw_params):
    """Pure-JAX eval-mode reference (unfused BN, dropout = identity)."""
    (w1, b1, g1, be1, m1, v1,
     w2, b2, g2, be2, m2, v2,
     w3, b3, g3, be3, m3, v3,
     wo, bo) = raw_params

    def sub(h, w, b, g, be, m, v):
        a = jnp.maximum(h @ w + b, 0.0)
        return (a - m) * jax.lax.rsqrt(v + BN_EPS) * g + be

    h = sub(x, w1, b1, g1, be1, m1, v1)
    h = sub(h, w2, b2, g2, be2, m2, v2)
    h = sub(h, w3, b3, g3, be3, m3, v3)
    return h @ wo + bo


if __name__ == "__main__":
    # Small shapes consistent with the module's forward: x is (batch, input_size).
    batch = 8
    input_size, h1, h2, h3, output_size = 32, 64, 64, 32, 16
    dropout_prob = 0.1  # unused in eval mode

    key = jax.random.PRNGKey(0)
    kx, kp = jax.random.split(key)
    x = jax.random.normal(kx, (batch, input_size), jnp.float32)

    raw = init_params(kp, input_size, h1, h2, h3, output_size)
    # compute_dtype=jnp.bfloat16 is recommended on v5e/v6e/v7x for production
    # sizes; f32 is used here so the 1e-4 allclose check is meaningful.
    params = prepare_params(raw, compute_dtype=jnp.float32)

    out = my_sequential_model(x, params, output_size)
    out = jax.block_until_ready(out)

    ref = reference_forward(x, raw)
    assert out.shape == (batch, output_size)
    assert jnp.allclose(out, ref, atol=1e-4, rtol=1e-4), "mismatch vs reference"

    print("KERNEL_OK")
</pallas_src>

<mosaic_0001>
module attributes {stable_mosaic.version = 11 : i64} {
  func.func @_mlp_kernel(%arg0: i32, %arg1: memref<8x128xf32, #tpu.memory_space<vmem>>, %arg2: memref<128x128xf32, #tpu.memory_space<vmem>>, %arg3: memref<1x128xf32, #tpu.memory_space<vmem>>, %arg4: memref<128x128xf32, #tpu.memory_space<vmem>>, %arg5: memref<1x128xf32, #tpu.memory_space<vmem>>, %arg6: memref<128x128xf32, #tpu.memory_space<vmem>>, %arg7: memref<1x128xf32, #tpu.memory_space<vmem>>, %arg8: memref<128x128xf32, #tpu.memory_space<vmem>>, %arg9: memref<1x128xf32, #tpu.memory_space<vmem>>, %arg10: memref<8x128xf32, #tpu.memory_space<vmem>>) attributes {dimension_semantics = [#tpu.dimension_semantics<parallel>], iteration_bounds = array<i64: 1>, scalar_prefetch = 0 : i64, scratch_operands = 0 : i64, tpu.core_type = #tpu.core_type<tc>, window_params = [{transform_indices = @transform_0, window_bounds = array<i64: 8, 128>}, {pipeline_mode = #tpu.pipeline_mode<synchronous>, transform_indices = @transform_1, window_bounds = array<i64: 128, 128>}, {pipeline_mode = #tpu.pipeline_mode<synchronous>, transform_indices = @transform_2, window_bounds = array<i64: 1, 128>}, {pipeline_mode = #tpu.pipeline_mode<synchronous>, transform_indices = @transform_3, window_bounds = array<i64: 128, 128>}, {pipeline_mode = #tpu.pipeline_mode<synchronous>, transform_indices = @transform_4, window_bounds = array<i64: 1, 128>}, {pipeline_mode = #tpu.pipeline_mode<synchronous>, transform_indices = @transform_5, window_bounds = array<i64: 128, 128>}, {pipeline_mode = #tpu.pipeline_mode<synchronous>, transform_indices = @transform_6, window_bounds = array<i64: 1, 128>}, {pipeline_mode = #tpu.pipeline_mode<synchronous>, transform_indices = @transform_7, window_bounds = array<i64: 128, 128>}, {pipeline_mode = #tpu.pipeline_mode<synchronous>, transform_indices = @transform_8, window_bounds = array<i64: 1, 128>}, {transform_indices = @transform_9, window_bounds = array<i64: 8, 128>}]} {
    %c0 = arith.constant 0 : index
    %c0_0 = arith.constant 0 : index
    %0 = vector.load %arg1[%c0, %c0_0] : memref<8x128xf32, #tpu.memory_space<vmem>>, vector<8x128xf32>
    %c0_1 = arith.constant 0 : index
    %c0_2 = arith.constant 0 : index
    %1 = vector.load %arg2[%c0_1, %c0_2] : memref<128x128xf32, #tpu.memory_space<vmem>>, vector<128x128xf32>
    %cst = arith.constant dense<0.000000e+00> : vector<8x128xf32>
    %2 = tpu.matmul %0, %1, %cst {dimension_numbers = #tpu.dot_dimension_numbers<[1], [0], [0], [1], [0, 0, 1, 1], [], []>} : vector<8x128xf32>, vector<128x128xf32>, vector<8x128xf32> -> vector<8x128xf32>
    %c0_3 = arith.constant 0 : index
    %c0_4 = arith.constant 0 : index
    %3 = vector.load %arg3[%c0_3, %c0_4] : memref<1x128xf32, #tpu.memory_space<vmem>>, vector<1x128xf32>
    %4 = vector.broadcast %3 : vector<1x128xf32> to vector<8x128xf32>
    %5 = arith.addf %2, %4 : vector<8x128xf32>
    %cst_5 = arith.constant 0.000000e+00 : f32
    %6 = vector.broadcast %cst_5 : f32 to vector<8x128xf32>
    %7 = arith.maximumf %5, %6 : vector<8x128xf32>
    %c0_6 = arith.constant 0 : index
    %c0_7 = arith.constant 0 : index
    %8 = vector.load %arg4[%c0_6, %c0_7] : memref<128x128xf32, #tpu.memory_space<vmem>>, vector<128x128xf32>
    %cst_8 = arith.constant dense<0.000000e+00> : vector<8x128xf32>
    %9 = tpu.matmul %7, %8, %cst_8 {dimension_numbers = #tpu.dot_dimension_numbers<[1], [0], [0], [1], [0, 0, 1, 1], [], []>} : vector<8x128xf32>, vector<128x128xf32>, vector<8x128xf32> -> vector<8x128xf32>
    %c0_9 = arith.constant 0 : index
    %c0_10 = arith.constant 0 : index
    %10 = vector.load %arg5[%c0_9, %c0_10] : memref<1x128xf32, #tpu.memory_space<vmem>>, vector<1x128xf32>
    %11 = vector.broadcast %10 : vector<1x128xf32> to vector<8x128xf32>
    %12 = arith.addf %9, %11 : vector<8x128xf32>
    %cst_11 = arith.constant 0.000000e+00 : f32
    %13 = vector.broadcast %cst_11 : f32 to vector<8x128xf32>
    %14 = arith.maximumf %12, %13 : vector<8x128xf32>
    %c0_12 = arith.constant 0 : index
    %c0_13 = arith.constant 0 : index
    %15 = vector.load %arg6[%c0_12, %c0_13] : memref<128x128xf32, #tpu.memory_space<vmem>>, vector<128x128xf32>
    %cst_14 = arith.constant dense<0.000000e+00> : vector<8x128xf32>
    %16 = tpu.matmul %14, %15, %cst_14 {dimension_numbers = #tpu.dot_dimension_numbers<[1], [0], [0], [1], [0, 0, 1, 1], [], []>} : vector<8x128xf32>, vector<128x128xf32>, vector<8x128xf32> -> vector<8x128xf32>
    %c0_15 = arith.constant 0 : index
    %c0_16 = arith.constant 0 : index
    %17 = vector.load %arg7[%c0_15, %c0_16] : memref<1x128xf32, #tpu.memory_space<vmem>>, vector<1x128xf32>
    %18 = vector.broadcast %17 : vector<1x128xf32> to vector<8x128xf32>
    %19 = arith.addf %16, %18 : vector<8x128xf32>
    %cst_17 = arith.constant 0.000000e+00 : f32
    %20 = vector.broadcast %cst_17 : f32 to vector<8x128xf32>
    %21 = arith.maximumf %19, %20 : vector<8x128xf32>
    %c0_18 = arith.constant 0 : index
    %c0_19 = arith.constant 0 : index
    %22 = vector.load %arg8[%c0_18, %c0_19] : memref<128x128xf32, #tpu.memory_space<vmem>>, vector<128x128xf32>
    %cst_20 = arith.constant dense<0.000000e+00> : vector<8x128xf32>
    %23 = tpu.matmul %21, %22, %cst_20 {dimension_numbers = #tpu.dot_dimension_numbers<[1], [0], [0], [1], [0, 0, 1, 1], [], []>} : vector<8x128xf32>, vector<128x128xf32>, vector<8x128xf32> -> vector<8x128xf32>
    %c0_21 = arith.constant 0 : index
    %c0_22 = arith.constant 0 : index
    %24 = vector.load %arg9[%c0_21, %c0_22] : memref<1x128xf32, #tpu.memory_space<vmem>>, vector<1x128xf32>
    %25 = vector.broadcast %24 : vector<1x128xf32> to vector<8x128xf32>
    %26 = arith.addf %23, %25 : vector<8x128xf32>
    %c0_23 = arith.constant 0 : index
    %c0_24 = arith.constant 0 : index
    %27 = vector.load %arg10[%c0_23, %c0_24] : memref<8x128xf32, #tpu.memory_space<vmem>>, vector<8x128xf32>
    tpu.vector_store %arg10[%c0_23, %c0_24], %26 {strides = array<i32>} : memref<8x128xf32, #tpu.memory_space<vmem>>, vector<8x128xf32>,
    return
  }
  func.func @transform_0(%arg0: i32) -> (i32, i32) {
    %c0_i32 = arith.constant 0 : i32
    %c0_i32_0 = arith.constant 0 : i32
    return %arg0, %c0_i32 : i32, i32
  }
  func.func @transform_1(%arg0: i32) -> (i32, i32) {
    %c0_i32 = arith.constant 0 : i32
    %c0_i32_0 = arith.constant 0 : i32
    %c0_i32_1 = arith.constant 0 : i32
    return %c0_i32, %c0_i32_0 : i32, i32
  }
  func.func @transform_2(%arg0: i32) -> (i32, i32) {
    %c0_i32 = arith.constant 0 : i32
    %c0_i32_0 = arith.constant 0 : i32
    %c0_i32_1 = arith.constant 0 : i32
    return %c0_i32, %c0_i32_0 : i32, i32
  }
  func.func @transform_3(%arg0: i32) -> (i32, i32) {
    %c0_i32 = arith.constant 0 : i32
    %c0_i32_0 = arith.constant 0 : i32
    %c0_i32_1 = arith.constant 0 : i32
    return %c0_i32, %c0_i32_0 : i32, i32
  }
  func.func @transform_4(%arg0: i32) -> (i32, i32) {
    %c0_i32 = arith.constant 0 : i32
    %c0_i32_0 = arith.constant 0 : i32
    %c0_i32_1 = arith.constant 0 : i32
    return %c0_i32, %c0_i32_0 : i32, i32
  }
  func.func @transform_5(%arg0: i32) -> (i32, i32) {
    %c0_i32 = arith.constant 0 : i32
    %c0_i32_0 = arith.constant 0 : i32
    %c0_i32_1 = arith.constant 0 : i32
    return %c0_i32, %c0_i32_0 : i32, i32
  }
  func.func @transform_6(%arg0: i32) -> (i32, i32) {
    %c0_i32 = arith.constant 0 : i32
    %c0_i32_0 = arith.constant 0 : i32
    %c0_i32_1 = arith.constant 0 : i32
    return %c0_i32, %c0_i32_0 : i32, i32
  }
  func.func @transform_7(%arg0: i32) -> (i32, i32) {
    %c0_i32 = arith.constant 0 : i32
    %c0_i32_0 = arith.constant 0 : i32
    %c0_i32_1 = arith.constant 0 : i32
    return %c0_i32, %c0_i32_0 : i32, i32
  }
  func.func @transform_8(%arg0: i32) -> (i32, i32) {
    %c0_i32 = arith.constant 0 : i32
    %c0_i32_0 = arith.constant 0 : i32
    %c0_i32_1 = arith.constant 0 : i32
    return %c0_i32, %c0_i32_0 : i32, i32
  }
  func.func @transform_9(%arg0: i32) -> (i32, i32) {
    %c0_i32 = arith.constant 0 : i32
    %c0_i32_0 = arith.constant 0 : i32
    return %arg0, %c0_i32 : i32, i32
  }
}

</mosaic_0001>

<llo_original>
// kernel: my_sequential_model.1
$region0: #{my_sequential_model.1}
  #allocation0 [shape = 'u32[]', space=smem, size = 0x4, offset = 0x4, fixed_abs, tag = 'smem constant byte address 0x4 - core index']
  #allocation1 [shape = 'u32[72,128]{1,0:T(1,128)}', space=vmem, size = 0x9000, scoped, tag = 'internal scratch']
  %s0 = inlined_call_operand.vmem [shape: f32[8,128], index: 0, kind: input, shape index: {}]
  %s1 = inlined_call_operand.hbm [shape: f32[128,128], index: 1, kind: input, shape index: {}]
  %s2 = inlined_call_operand.vmem [shape: f32[1,128], index: 2, kind: input, shape index: {}]
  %s3 = inlined_call_operand.hbm [shape: f32[128,128], index: 3, kind: input, shape index: {}]
  %s4 = inlined_call_operand.vmem [shape: f32[1,128], index: 4, kind: input, shape index: {}]
  %s5 = inlined_call_operand.hbm [shape: f32[128,128], index: 5, kind: input, shape index: {}]
  %s6 = inlined_call_operand.vmem [shape: f32[1,128], index: 6, kind: input, shape index: {}]
  %s7 = inlined_call_operand.hbm [shape: f32[128,128], index: 7, kind: input, shape index: {}]
  %s8 = inlined_call_operand.vmem [shape: f32[1,128], index: 8, kind: input, shape index: {}]
  %s9 = inlined_call_operand.hbm [shape: f32[8,128], index: 9, kind: output, shape index: {}]
  %s10 = sld [smem:[#allocation0]]
  $region62: #{my_sequential_model.1} parent=0
    _
  %s12 = ssub.s32 1, %s10
  %s13 = scalar_select 0, %s12, %s10
  $region1: #{my_sequential_model.1} parent=0
    #allocation2 [shape = 'u8[65536]{0}', space=vmem, size = 0x10000, scoped, tag = 'input window, operand 1, single buffered']
    #allocation3 [shape = 's32[1]{0}', space=sflag, size = 0x4, scoped, tag = 'scoped memory for my_sequential_model.1']
    #allocation4 [shape = 's32[1]{0}', space=sflag, size = 0x4, scoped, tag = 'scoped memory for my_sequential_model.1']
    #allocation5 [shape = 'u8[65536]{0}', space=vmem, size = 0x10000, scoped, tag = 'input window, operand 3, single buffered']
    #allocation6 [shape = 's32[1]{0}', space=sflag, size = 0x4, scoped, tag = 'scoped memory for my_sequential_model.1']
    #allocation7 [shape = 'u8[65536]{0}', space=vmem, size = 0x10000, scoped, tag = 'input window, operand 5, single buffered']
    #allocation8 [shape = 'u8[65536]{0}', space=vmem, size = 0x10000, scoped, tag = 'input window, operand 7, single buffered']
    #allocation9 [shape = 's32[1]{0}', space=sflag, size = 0x4, scoped, tag = 'scoped memory for my_sequential_model.1']
    #allocation10 [shape = 'u8[4096]{0}', space=vmem, size = 0x1000, scoped, tag = 'output window, operand 0, single buffered']
    %14 = vsyncpa [#allocation3], 0
    %15 = vsyncpa [#allocation6], 0
    %16 = vsyncpa [#allocation9], 0
    %17 = vsyncpa [#allocation4], 0
    // Predicated region
    $region2: #{my_sequential_model.1} parent=1 // pred_check
      _
    $region3: #{my_sequential_model.1} parent=1 // pred_check_branch
      %19 = sbr.rel (0) target = $region5
    $region4: #{my_sequential_model.1} parent=1 // pred_region
      _
    $region5: #{my_sequential_model.1} parent=1 // pred_fallthru
      _
    // Predicated region
    $region6: #{my_sequential_model.1} parent=1 // pred_check
      _
    $region7: #{my_sequential_model.1} parent=1 // pred_check_branch
      %21 = sbr.rel (0) target = $region9
    $region8: #{my_sequential_model.1} parent=1 // pred_region
      %23 = vsyncadd [#allocation3], 0
      %s24 = sshll.u32 %s1, 4
      %s25 = int_to_ptr.hbm [resolvable:$true] %s24
      %s26 = sshll.u32 [#allocation2], 4
      %s27 = int_to_ptr.vmem [resolvable:$true] %s26
      %32 = dma.hbm_to_vmem [thread:$0]  %s25, 2048, %s27, [#allocation3], 128, 128, 8
    $region9: #{my_sequential_model.1} parent=1 // pred_fallthru
      _
    // Predicated region
    $region10: #{my_sequential_model.1} parent=1 // pred_check
      _
    $region11: #{my_sequential_model.1} parent=1 // pred_check_branch
      %34 = sbr.rel (0) target = $region13
    $region12: #{my_sequential_model.1} parent=1 // pred_region
      _
    $region13: #{my_sequential_model.1} parent=1 // pred_fallthru
      _
    // Predicated region
    $region14: #{my_sequential_model.1} parent=1 // pred_check
      _
    $region15: #{my_sequential_model.1} parent=1 // pred_check_branch
      %36 = sbr.rel (0) target = $region17
    $region16: #{my_sequential_model.1} parent=1 // pred_region
      %38 = vsyncadd [#allocation6], 0
      %s39 = sshll.u32 %s3, 4
      %s40 = int_to_ptr.hbm [resolvable:$true] %s39
      %s41 = sshll.u32 [#allocation5], 4
      %s42 = int_to_ptr.vmem [resolvable:$true] %s41
      %47 = dma.hbm_to_vmem [thread:$0]  %s40, 2048, %s42, [#allocation6], 128, 128, 8
    $region17: #{my_sequential_model.1} parent=1 // pred_fallthru
      _
    // Predicated region
    $region18: #{my_sequential_model.1} parent=1 // pred_check
      _
    $region19: #{my_sequential_model.1} parent=1 // pred_check_branch
      %49 = sbr.rel (0) target = $region21
    $region20: #{my_sequential_model.1} parent=1 // pred_region
      _
    $region21: #{my_sequential_model.1} parent=1 // pred_fallthru
      _
    // Predicated region
    $region22: #{my_sequential_model.1} parent=1 // pred_check
      _
    $region23: #{my_sequential_model.1} parent=1 // pred_check_branch
      %51 = sbr.rel (0) target = $region25
    $region24: #{my_sequential_model.1} parent=1 // pred_region
      %53 = vsyncadd [#allocation6], 0
      %s54 = sshll.u32 %s5, 4
      %s55 = int_to_ptr.hbm [resolvable:$true] %s54
      %s56 = sshll.u32 [#allocation7], 4
      %s57 = int_to_ptr.vmem [resolvable:$true] %s56
      %62 = dma.hbm_to_vmem [thread:$0]  %s55, 2048, %s57, [#allocation6], 128, 128, 8
    $region25: #{my_sequential_model.1} parent=1 // pred_fallthru
      _
    // Predicated region
    $region26: #{my_sequential_model.1} parent=1 // pred_check
      _
    $region27: #{my_sequential_model.1} parent=1 // pred_check_branch
      %64 = sbr.rel (0) target = $region29
    $region28: #{my_sequential_model.1} parent=1 // pred_region
      _
    $region29: #{my_sequential_model.1} parent=1 // pred_fallthru
      _
    // Predicated region
    $region30: #{my_sequential_model.1} parent=1 // pred_check
      _
    $region31: #{my_sequential_model.1} parent=1 // pred_check_branch
      %66 = sbr.rel (0) target = $region33
    $region32: #{my_sequential_model.1} parent=1 // pred_region
      %68 = vsyncadd [#allocation9], 0
      %s69 = sshll.u32 %s7, 4
      %s70 = int_to_ptr.hbm [resolvable:$true] %s69
      %s71 = sshll.u32 [#allocation8], 4
      %s72 = int_to_ptr.vmem [resolvable:$true] %s71
      %77 = dma.hbm_to_vmem [thread:$0]  %s70, 2048, %s72, [#allocation9], 128, 128, 8
    $region33: #{my_sequential_model.1} parent=1 // pred_fallthru
      _
    // Predicated region
    $region34: #{my_sequential_model.1} parent=1 // pred_check
      _
    $region35: #{my_sequential_model.1} parent=1 // pred_check_branch
      %79 = sbr.rel (0) target = $region37
    $region36: #{my_sequential_model.1} parent=1 // pred_region
      _
    $region37: #{my_sequential_model.1} parent=1 // pred_fallthru
      _
    // Predicated region
    $region38: #{my_sequential_model.1} parent=1 // pred_check
      _
    $region39: #{my_sequential_model.1} parent=1 // pred_check_branch
      %81 = sbr.rel (0) target = $region41
    $region40: #{my_sequential_model.1} parent=1 // pred_region
      %83 = dma.done [#allocation3], 2048
    $region41: #{my_sequential_model.1} parent=1 // pred_fallthru
      _
    // Predicated region
    $region42: #{my_sequential_model.1} parent=1 // pred_check
      _
    $region43: #{my_sequential_model.1} parent=1 // pred_check_branch
      %85 = sbr.rel (0) target = $region45
    $region44: #{my_sequential_model.1} parent=1 // pred_region
      %87 = dma.done [#allocation6], 2048
    $region45: #{my_sequential_model.1} parent=1 // pred_fallthru
      _
    // Predicated region
    $region46: #{my_sequential_model.1} parent=1 // pred_check
      _
    $region47: #{my_sequential_model.1} parent=1 // pred_check_branch
      %89 = sbr.rel (0) target = $region49
    $region48: #{my_sequential_model.1} parent=1 // pred_region
      %91 = dma.done [#allocation6], 2048
    $region49: #{my_sequential_model.1} parent=1 // pred_fallthru
      _
    // Predicated region
    $region50: #{my_sequential_model.1} parent=1 // pred_check
      _
    $region51: #{my_sequential_model.1} parent=1 // pred_check_branch
      %93 = sbr.rel (0) target = $region53
    $region52: #{my_sequential_model.1} parent=1 // pred_region
      %95 = dma.done [#allocation9], 2048
    $region53: #{my_sequential_model.1} parent=1 // pred_fallthru
      _
    %v96 = vld [vmem:[%s0] sm:$0xff]
    %v97 = vld [vmem:[#allocation2] sm:$0xff]
    %v98 = vld [vmem:[#allocation2 + $0x8] sm:$0xff]
    %v99 = vld [vmem:[#allocation2 + $0x10] sm:$0xff]
    %v100 = vld [vmem:[#allocation2 + $0x18] sm:$0xff]
    %v101 = vld [vmem:[#allocation2 + $0x20] sm:$0xff]
    %v102 = vld [vmem:[#allocation2 + $0x28] sm:$0xff]
    %v103 = vld [vmem:[#allocation2 + $0x30] sm:$0xff]
    %v104 = vld [vmem:[#allocation2 + $0x38] sm:$0xff]
    %v105 = vld [vmem:[#allocation2 + $0x40] sm:$0xff]
    %v106 = vld [vmem:[#allocation2 + $0x48] sm:$0xff]
    %v107 = vld [vmem:[#allocation2 + $0x50] sm:$0xff]
    %v108 = vld [vmem:[#allocation2 + $0x58] sm:$0xff]
    %v109 = vld [vmem:[#allocation2 + $0x60] sm:$0xff]
    %v110 = vld [vmem:[#allocation2 + $0x68] sm:$0xff]
    %v111 = vld [vmem:[#allocation2 + $0x70] sm:$0xff]
    %v112 = vld [vmem:[#allocation2 + $0x78] sm:$0xff]
    %v113 = vld [vmem:[%s2] sm:$0x1]
    %v115 = vperm.slane %v113, 0
    %117 = vmatpush.msra.mxu0 %v112
    %118 = vmatpush.msra.mxu0 %v111
    %119 = vmatpush.msra.mxu0 %v110
    %120 = vmatpush.msra.mxu0 %v109
    %121 = vmatpush.msra.mxu0 %v108
    %122 = vmatpush.msra.mxu0 %v107
    %123 = vmatpush.msra.mxu0 %v106
    %124 = vmatpush.msra.mxu0 %v105
    %125 = vmatpush.msra.mxu0 %v104
    %126 = vmatpush.msra.mxu0 %v103
    %127 = vmatpush.msra.mxu0 %v102
    %128 = vmatpush.msra.mxu0 %v101
    %129 = vmatpush.msra.mxu0 %v100
    %130 = vmatpush.msra.mxu0 %v99
    %131 = vmatpush.msra.mxu0 %v98
    %132 = vmatpush.msra.mxu0 %v97
    %133 = vmatmul.f32.gmra.mxu0 %v96
    %v134 = vpop.f32.mrf.mxu0
    %v135 = vadd.f32 %v115, %v134
    %136 = vdwg.mxu0
    %v137 = vmax.f32 %v135, 0.0
    %v138 = vld [vmem:[#allocation5] sm:$0xff]
    %v139 = vld [vmem:[#allocation5 + $0x8] sm:$0xff]
    %v140 = vld [vmem:[#allocation5 + $0x10] sm:$0xff]
    %v141 = vld [vmem:[#allocation5 + $0x18] sm:$0xff]
    %v142 = vld [vmem:[#allocation5 + $0x20] sm:$0xff]
    %v143 = vld [vmem:[#allocation5 + $0x28] sm:$0xff]
    %v144 = vld [vmem:[#allocation5 + $0x30] sm:$0xff]
    %v145 = vld [vmem:[#allocation5 + $0x38] sm:$0xff]
    %v146 = vld [vmem:[#allocation5 + $0x40] sm:$0xff]
    %v147 = vld [vmem:[#allocation5 + $0x48] sm:$0xff]
    %v148 = vld [vmem:[#allocation5 + $0x50] sm:$0xff]
    %v149 = vld [vmem:[#allocation5 + $0x58] sm:$0xff]
    %v150 = vld [vmem:[#allocation5 + $0x60] sm:$0xff]
    %v151 = vld [vmem:[#allocation5 + $0x68] sm:$0xff]
    %v152 = vld [vmem:[#allocation5 + $0x70] sm:$0xff]
    %v153 = vld [vmem:[#allocation5 + $0x78] sm:$0xff]
    %v154 = vld [vmem:[%s4] sm:$0x1]
    %v156 = vperm.slane %v154, 0
    %158 = vmatpush.msra.mxu0 %v153
    %159 = vmatpush.msra.mxu0 %v152
    %160 = vmatpush.msra.mxu0 %v151
    %161 = vmatpush.msra.mxu0 %v150
    %162 = vmatpush.msra.mxu0 %v149
    %163 = vmatpush.msra.mxu0 %v148
    %164 = vmatpush.msra.mxu0 %v147
    %165 = vmatpush.msra.mxu0 %v146
    %166 = vmatpush.msra.mxu0 %v145
    %167 = vmatpush.msra.mxu0 %v144
    %168 = vmatpush.msra.mxu0 %v143
    %169 = vmatpush.msra.mxu0 %v142
    %170 = vmatpush.msra.mxu0 %v141
    %171 = vmatpush.msra.mxu0 %v140
    %172 = vmatpush.msra.mxu0 %v139
    %173 = vmatpush.msra.mxu0 %v138
    %174 = vmatmul.f32.gmra.mxu0 %v137
    %v175 = vpop.f32.mrf.mxu0
    %v176 = vadd.f32 %v156, %v175
    %177 = vdwg.mxu0
    %v178 = vmax.f32 %v176, 0.0
    %v179 = vld [vmem:[#allocation7] sm:$0xff]
    %v180 = vld [vmem:[#allocation7 + $0x8] sm:$0xff]
    %v181 = vld [vmem:[#allocation7 + $0x10] sm:$0xff]
    %v182 = vld [vmem:[#allocation7 + $0x18] sm:$0xff]
    %v183 = vld [vmem:[#allocation7 + $0x20] sm:$0xff]
    %v184 = vld [vmem:[#allocation7 + $0x28] sm:$0xff]
    %v185 = vld [vmem:[#allocation7 + $0x30] sm:$0xff]
    %v186 = vld [vmem:[#allocation7 + $0x38] sm:$0xff]
    %v187 = vld [vmem:[#allocation7 + $0x40] sm:$0xff]
    %v188 = vld [vmem:[#allocation7 + $0x48] sm:$0xff]
    %v189 = vld [vmem:[#allocation7 + $0x50] sm:$0xff]
    %v190 = vld [vmem:[#allocation7 + $0x58] sm:$0xff]
    %v191 = vld [vmem:[#allocation7 + $0x60] sm:$0xff]
    %v192 = vld [vmem:[#allocation7 + $0x68] sm:$0xff]
    %v193 = vld [vmem:[#allocation7 + $0x70] sm:$0xff]
    %v194 = vld [vmem:[#allocation7 + $0x78] sm:$0xff]
    %v195 = vld [vmem:[%s6] sm:$0x1]
    %v197 = vperm.slane %v195, 0
    %199 = vmatpush.msra.mxu0 %v194
    %200 = vmatpush.msra.mxu0 %v193
    %201 = vmatpush.msra.mxu0 %v192
    %202 = vmatpush.msra.mxu0 %v191
    %203 = vmatpush.msra.mxu0 %v190
    %204 = vmatpush.msra.mxu0 %v189
    %205 = vmatpush.msra.mxu0 %v188
    %206 = vmatpush.msra.mxu0 %v187
    %207 = vmatpush.msra.mxu0 %v186
    %208 = vmatpush.msra.mxu0 %v185
    %209 = vmatpush.msra.mxu0 %v184
    %210 = vmatpush.msra.mxu0 %v183
    %211 = vmatpush.msra.mxu0 %v182
    %212 = vmatpush.msra.mxu0 %v181
    %213 = vmatpush.msra.mxu0 %v180
    %214 = vmatpush.msra.mxu0 %v179
    %215 = vmatmul.f32.gmra.mxu0 %v178
    %v216 = vpop.f32.mrf.mxu0
    %v217 = vadd.f32 %v197, %v216
    %218 = vdwg.mxu0
    %v219 = vmax.f32 %v217, 0.0
    %v220 = vld [vmem:[#allocation8] sm:$0xff]
    %v221 = vld [vmem:[#allocation8 + $0x8] sm:$0xff]
    %v222 = vld [vmem:[#allocation8 + $0x10] sm:$0xff]
    %v223 = vld [vmem:[#allocation8 + $0x18] sm:$0xff]
    %v224 = vld [vmem:[#allocation8 + $0x20] sm:$0xff]
    %v225 = vld [vmem:[#allocation8 + $0x28] sm:$0xff]
    %v226 = vld [vmem:[#allocation8 + $0x30] sm:$0xff]
    %v227 = vld [vmem:[#allocation8 + $0x38] sm:$0xff]
    %v228 = vld [vmem:[#allocation8 + $0x40] sm:$0xff]
    %v229 = vld [vmem:[#allocation8 + $0x48] sm:$0xff]
    %v230 = vld [vmem:[#allocation8 + $0x50] sm:$0xff]
    %v231 = vld [vmem:[#allocation8 + $0x58] sm:$0xff]
    %v232 = vld [vmem:[#allocation8 + $0x60] sm:$0xff]
    %v233 = vld [vmem:[#allocation8 + $0x68] sm:$0xff]
    %v234 = vld [vmem:[#allocation8 + $0x70] sm:$0xff]
    %v235 = vld [vmem:[#allocation8 + $0x78] sm:$0xff]
    %v236 = vld [vmem:[%s8] sm:$0x1]
    %v238 = vperm.slane %v236, 0
    %240 = vmatpush.msra.mxu0 %v235
    %241 = vmatpush.msra.mxu0 %v234
    %242 = vmatpush.msra.mxu0 %v233
    %243 = vmatpush.msra.mxu0 %v232
    %244 = vmatpush.msra.mxu0 %v231
    %245 = vmatpush.msra.mxu0 %v230
    %246 = vmatpush.msra.mxu0 %v229
    %247 = vmatpush.msra.mxu0 %v228
    %248 = vmatpush.msra.mxu0 %v227
    %249 = vmatpush.msra.mxu0 %v226
    %250 = vmatpush.msra.mxu0 %v225
    %251 = vmatpush.msra.mxu0 %v224
    %252 = vmatpush.msra.mxu0 %v223
    %253 = vmatpush.msra.mxu0 %v222
    %254 = vmatpush.msra.mxu0 %v221
    %255 = vmatpush.msra.mxu0 %v220
    %256 = vmatmul.f32.gmra.mxu0 %v219
    %v257 = vpop.f32.mrf.mxu0
    %v258 = vadd.f32 %v238, %v257
    %259 = vdwg.mxu0
    %260 = vst [vmem:[#allocation10] sm:$0xff] %v258
    // Predicated region
    $region54: #{my_sequential_model.1} parent=1 // pred_check
      _
    $region55: #{my_sequential_model.1} parent=1 // pred_check_branch
      %262 = sbr.rel (0) target = $region57
    $region56: #{my_sequential_model.1} parent=1 // pred_region
      %264 = vsyncadd [#allocation4], 0
      %s266 = sshll.u32 [#allocation10], 4
      %s267 = int_to_ptr.vmem [resolvable:$true] %s266
      %s268 = sshll.u32 %s9, 4
      %s269 = int_to_ptr.hbm [resolvable:$true] %s268
      %271 = dma.vmem_to_hbm [thread:$0]  %s267, 128, %s269, [#allocation4]
    $region57: #{my_sequential_model.1} parent=1 // pred_fallthru
      _
    // Predicated region
    $region58: #{my_sequential_model.1} parent=1 // pred_check
      _
    $region59: #{my_sequential_model.1} parent=1 // pred_check_branch
      %273 = sbr.rel (0) target = $region61
    $region60: #{my_sequential_model.1} parent=1 // pred_region
      %275 = dma.done [#allocation4], 128
    $region61: #{my_sequential_model.1} parent=1 // pred_fallthru
      _
    %276 = vsyncpa [#allocation3], 1
    %277 = vsyncpa [#allocation6], 1
    %278 = vsyncpa [#allocation9], 1
    %279 = vsyncpa [#allocation4], 1

</llo_original>
